<compile_context>
chip_gen: v7x
topology: tpu7x:2x2x1
jax: 0.10.0
libtpu: 0.0.40
codegen_flags: <defaults>
</compile_context>

<pallas_src>
import functools

import jax
import jax.numpy as jnp
from jax.experimental import pallas as pl
from jax.experimental.pallas import tpu as pltpu

_LANE = 128                   # TPU lane width; last dim of the 2-D view
_MAX_TILE_BYTES = 8 << 20     # ~8 MiB per block per operand
_VMEM_LIMIT_BYTES = 40 << 20  # 2 operands x 2 buffers x 8 MiB = 32 MiB + slack


def _sublane_multiple(dtype):
    # Native TPU tiles: (8,128) for 32-bit, (16,128) for bf16/f16, (32,128)
    # for int8/fp8 (sub-32-bit dtypes pack along sublanes).
    itemsize = jnp.dtype(dtype).itemsize
    return 8 * max(1, 4 // max(itemsize, 1))


def _round_up(x, m):
    return ((x + m - 1) // m) * m


def _affine_kernel(x_ref, o_ref, *, scale, offset):
    # Elementwise VPU hot path; scale/offset are compile-time immediates.
    x = x_ref[...].astype(jnp.float32)
    o_ref[...] = (x * scale + offset).astype(o_ref.dtype)


def _affine(x, scale, offset):
    """y = x*scale + offset elementwise via a lane-dense, tiled Pallas kernel."""
    scale = float(scale)
    offset = float(offset)
    orig_shape = x.shape
    n = x.size

    # Plain-jnp fallback when the contiguous buffer cannot be viewed as
    # (rows, 128) without a padding copy; XLA handles these tiny/ragged cases
    # at roofline and can fuse them with neighboring ops.
    if n == 0 or n % _LANE != 0:
        return (x.astype(jnp.float32) * scale + offset).astype(x.dtype)

    rows = n // _LANE
    sub = _sublane_multiple(x.dtype)
    itemsize = jnp.dtype(x.dtype).itemsize
    max_rows = max(sub, (_MAX_TILE_BYTES // (_LANE * itemsize)) // sub * sub)

    if rows <= 2 * sub:
        # Tiny input: a single full-array block (2nd-to-last dim == full dim
        # is always a legal block shape, regardless of sublane alignment).
        tile_rows = rows
    else:
        # >= 2 grid steps so v7x's two TensorCores each drive an HBM stream;
        # block capped at ~8 MiB to amortize per-step pipeline overhead.
        tile_rows = min(max_rows, _round_up(pl.cdiv(rows, 2), sub))

    grid = (pl.cdiv(rows, tile_rows),)

    # Free (no-copy) view of the contiguous buffer; no pad, no tail slice.
    # A ragged final block (rows % tile_rows != 0) is masked by Pallas.
    x2 = x.reshape(rows, _LANE)

    out2 = pl.pallas_call(
        functools.partial(_affine_kernel, scale=scale, offset=offset),
        out_shape=jax.ShapeDtypeStruct((rows, _LANE), x.dtype),
        grid=grid,
        in_specs=[pl.BlockSpec((tile_rows, _LANE), lambda i: (i, 0))],
        out_specs=pl.BlockSpec((tile_rows, _LANE), lambda i: (i, 0)),
        compiler_params=pltpu.CompilerParams(
            dimension_semantics=("parallel",),
            vmem_limit_bytes=_VMEM_LIMIT_BYTES),
        cost_estimate=pl.CostEstimate(
            flops=2 * n, transcendentals=0, bytes_accessed=2 * n * itemsize),
    )(x2)

    return out2.reshape(orig_shape)


class BaseColor:
    """JAX/Pallas port of the PyTorch BaseColor module (LAB normalization)."""

    def __init__(self):
        self.l_cent = 50.0
        self.l_norm = 100.0
        self.ab_norm = 128.0

    # (x - l_cent) / l_norm  ==  x * (1/l_norm) + (-l_cent/l_norm)
    def normalize_l(self, in_l):
        return _affine(in_l, 1.0 / self.l_norm, -self.l_cent / self.l_norm)

    # x * l_norm + l_cent
    def unnormalize_l(self, in_l):
        return _affine(in_l, self.l_norm, self.l_cent)

    # x / ab_norm
    def normalize_ab(self, in_ab):
        return _affine(in_ab, 1.0 / self.ab_norm, 0.0)

    # x * ab_norm
    def unnormalize_ab(self, in_ab):
        return _affine(in_ab, self.ab_norm, 0.0)

    # (x + ab_norm) / (2*ab_norm)
    def ab_128_to_01(self, in_ab):
        return _affine(in_ab, 1.0 / (2.0 * self.ab_norm), 0.5)

    # x * (2*ab_norm) - ab_norm
    def ab_01_to_128(self, in_ab):
        return _affine(in_ab, 2.0 * self.ab_norm, -self.ab_norm)

    def forward(self, input_l):
        # TODO(synk): PyTorch forward is a stub returning None; we return
        # normalize_l(input_l) as the canonical base-class behavior.
        return self.normalize_l(input_l)

    __call__ = forward


if __name__ == "__main__":
    key = jax.random.PRNGKey(0)
    k1, k2, k3 = jax.random.split(key, 3)

    # L channel: NCHW with C=1; ab channels: NCHW with C=2.
    x_l = jax.random.uniform(k1, (2, 1, 16, 16), dtype=jnp.float32) * 100.0
    x_ab = jax.random.uniform(k2, (2, 2, 16, 16), dtype=jnp.float32) * 256.0 - 128.0
    # Slightly larger L input to exercise the multi-step (2-TC) grid path.
    x_l_big = jax.random.uniform(k3, (2, 1, 64, 64), dtype=jnp.float32) * 100.0

    m = BaseColor()

    # Run the kernels and verify against plain-JAX references.
    y_l = jax.block_until_ready(m(x_l))
    y_l_un = jax.block_until_ready(m.unnormalize_l(y_l))
    y_ab = jax.block_until_ready(m.normalize_ab(x_ab))
    y_ab_un = jax.block_until_ready(m.unnormalize_ab(y_ab))
    y_01 = jax.block_until_ready(m.ab_128_to_01(x_ab))
    y_128 = jax.block_until_ready(m.ab_01_to_128(y_01))
    y_l_big = jax.block_until_ready(m.normalize_l(x_l_big))

    assert jnp.allclose(y_l, (x_l - 50.0) / 100.0, atol=1e-5)
    assert jnp.allclose(y_l_un, x_l, atol=1e-3)
    assert jnp.allclose(y_ab, x_ab / 128.0, atol=1e-5)
    assert jnp.allclose(y_ab_un, x_ab, atol=1e-3)
    assert jnp.allclose(y_01, (x_ab + 128.0) / 256.0, atol=1e-5)
    assert jnp.allclose(y_128, x_ab, atol=1e-3)
    assert jnp.allclose(y_l_big, (x_l_big - 50.0) / 100.0, atol=1e-5)

    print("KERNEL_OK")
</pallas_src>

<mosaic_0001>
module attributes {stable_mosaic.version = 11 : i64} {
  func.func @_affine_kernel(%arg0: i32, %arg1: memref<4x128xf32, #tpu.memory_space<vmem>>, %arg2: memref<4x128xf32, #tpu.memory_space<vmem>>) attributes {dimension_semantics = [#tpu.dimension_semantics<parallel>], iteration_bounds = array<i64: 1>, scalar_prefetch = 0 : i64, scratch_operands = 0 : i64, tpu.core_type = #tpu.core_type<tc>, window_params = [{transform_indices = @transform_0, window_bounds = array<i64: 4, 128>}, {transform_indices = @transform_1, window_bounds = array<i64: 4, 128>}]} {
    %c0 = arith.constant 0 : index
    %c0_0 = arith.constant 0 : index
    %0 = vector.load %arg1[%c0, %c0_0] : memref<4x128xf32, #tpu.memory_space<vmem>>, vector<4x128xf32>
    %cst = arith.constant 0.00999999977 : f32
    %1 = vector.broadcast %cst : f32 to vector<4x128xf32>
    %2 = arith.mulf %0, %1 : vector<4x128xf32>
    %cst_1 = arith.constant -5.000000e-01 : f32
    %3 = vector.broadcast %cst_1 : f32 to vector<4x128xf32>
    %4 = arith.addf %2, %3 : vector<4x128xf32>
    %c0_2 = arith.constant 0 : index
    %c0_3 = arith.constant 0 : index
    %5 = vector.load %arg2[%c0_2, %c0_3] : memref<4x128xf32, #tpu.memory_space<vmem>>, vector<4x128xf32>
    tpu.vector_store %arg2[%c0_2, %c0_3], %4 {strides = array<i32>} : memref<4x128xf32, #tpu.memory_space<vmem>>, vector<4x128xf32>,
    return
  }
  func.func @transform_0(%arg0: i32) -> (i32, i32) {
    %c0_i32 = arith.constant 0 : i32
    %c0_i32_0 = arith.constant 0 : i32
    return %arg0, %c0_i32 : i32, i32
  }
  func.func @transform_1(%arg0: i32) -> (i32, i32) {
    %c0_i32 = arith.constant 0 : i32
    %c0_i32_0 = arith.constant 0 : i32
    return %arg0, %c0_i32 : i32, i32
  }
}

</mosaic_0001>

<llo_original>
// kernel: tpu_custom_call.1
$region0: #{tpu_custom_call.1}
  #allocation0 [shape = 'u32[]', space=smem, size = 0x4, offset = 0x4, fixed_abs, tag = 'smem constant byte address 0x4 - core index']
  #allocation1 [shape = 'u32[144,128]{1,0:T(1,128)}', space=vmem, size = 0x12000, scoped, tag = 'internal scratch']
  %s0 = inlined_call_operand.hbm [shape: f32[4,128], index: 0, kind: input, shape index: {}]
  %s1 = inlined_call_operand.hbm [shape: f32[4,128], index: 1, kind: output, shape index: {}]
  %s2 = sld [smem:[#allocation0]]
  $region18: #{tpu_custom_call.1} parent=0
    _
  %s4 = ssub.s32 1, %s2
  %s5 = scalar_select 0, %s4, %s2
  $region1: #{tpu_custom_call.1} parent=0
    #allocation2 [shape = 'u8[2048]{0}', space=vmem, size = 0x800, scoped, tag = 'input window, operand 0, single buffered']
    #allocation3 [shape = 's32[1]{0}', space=sflag, size = 0x4, scoped, tag = 'scoped memory for tpu_custom_call.1']
    #allocation4 [shape = 's32[1]{0}', space=sflag, size = 0x4, scoped, tag = 'scoped memory for tpu_custom_call.1']
    #allocation5 [shape = 'u8[2048]{0}', space=vmem, size = 0x800, scoped, tag = 'output window, operand 0, single buffered']
    %6 = vsyncpa [#allocation3], 0
    %7 = vsyncpa [#allocation4], 0
    // Predicated region
    $region2: #{tpu_custom_call.1} parent=1 // pred_check
      _
    $region3: #{tpu_custom_call.1} parent=1 // pred_check_branch
      %9 = sbr.rel (0) target = $region5
    $region4: #{tpu_custom_call.1} parent=1 // pred_region
      %s11 = ssub.s32 64, 64
      %12 = vsyncadd [#allocation3], %s11
      %s14 = sshll.u32 [#allocation2], 4
      %s15 = int_to_ptr.vmem [resolvable:$true] %s14
      %17 = dma.hbm_to_vmem [thread:$0]  %s0, 64, %s15, [#allocation3]
    $region5: #{tpu_custom_call.1} parent=1 // pred_fallthru
      _
    // Predicated region
    $region6: #{tpu_custom_call.1} parent=1 // pred_check
      _
    $region7: #{tpu_custom_call.1} parent=1 // pred_check_branch
      %19 = sbr.rel (0) target = $region9
    $region8: #{tpu_custom_call.1} parent=1 // pred_region
      %20 = dma.done [#allocation3], 64
    $region9: #{tpu_custom_call.1} parent=1 // pred_fallthru
      _
    %v21 = vld [vmem:[#allocation2] sm:$0xf]
    %v22 = vmul.f32 %v21, 0.01
    %v23 = vadd.f32 %v22, -0.5
    %24 = vst [vmem:[#allocation5] sm:$0xf] %v23
    // Predicated region
    $region10: #{tpu_custom_call.1} parent=1 // pred_check
      _
    $region11: #{tpu_custom_call.1} parent=1 // pred_check_branch
      %26 = sbr.rel (0) target = $region13
    $region12: #{tpu_custom_call.1} parent=1 // pred_region
      %s28 = ssub.s32 64, 64
      %29 = vsyncadd [#allocation4], %s28
      %s31 = sshll.u32 [#allocation5], 4
      %s32 = int_to_ptr.vmem [resolvable:$true] %s31
      %34 = dma.vmem_to_hbm [thread:$0]  %s32, 64, %s1, [#allocation4]
    $region13: #{tpu_custom_call.1} parent=1 // pred_fallthru
      _
    // Predicated region
    $region14: #{tpu_custom_call.1} parent=1 // pred_check
      _
    $region15: #{tpu_custom_call.1} parent=1 // pred_check_branch
      %36 = sbr.rel (0) target = $region17
    $region16: #{tpu_custom_call.1} parent=1 // pred_region
      %37 = dma.done [#allocation4], 64
    $region17: #{tpu_custom_call.1} parent=1 // pred_fallthru
      _
    %38 = vsyncpa [#allocation3], 1
    %39 = vsyncpa [#allocation4], 1

</llo_original>
